<compile_context>
chip_gen: v5e
topology: v5e:2x2
jax: 0.10.0
libtpu: 0.0.40
codegen_flags: <defaults>
</compile_context>

<pallas_src>
import functools

import numpy as np
import jax
import jax.numpy as jnp
from jax.experimental import pallas as pl
from jax.experimental.pallas import tpu as pltpu


# --------------------------------------------------------------------------- #
# Kernel body
# --------------------------------------------------------------------------- #
def _dequant_kernel(x_ref, u_ref, out_ref, ld_ref, *,
                    inv_max_val, eps, const, tn, n_valid, mask_cols):
    xf = x_ref[...]
    if jnp.issubdtype(xf.dtype, jnp.integer) and xf.dtype != jnp.int32:
        xf = xf.astype(jnp.int32)          # cheap VPU widen for narrow ints
    xf = xf.astype(jnp.float32)

    y = (xf + u_ref[...]) * inv_max_val
    y = (1.0 - eps) * y + eps * 0.5

    ly = jnp.log(y)
    l1y = jnp.log(1.0 - y)

    out_ref[...] = ly - l1y                # logit(y)
    ld = -(ly + l1y)                       # log(1 / (y - y^2))

    if mask_cols:                          # static flag: only when N was padded
        col = (jax.lax.broadcasted_iota(jnp.int32, ld.shape, 1)
               + pl.program_id(1) * tn)
        ld = jnp.where(col < n_valid, ld, 0.0)

    # log-det block is resident across the (arbitrary) N axis.
    @pl.when(pl.program_id(1) == 0)
    def _():
        ld_ref[...] = jnp.full(ld_ref.shape, const, dtype=ld_ref.dtype)

    ld_ref[...] += jnp.sum(ld, axis=-1, keepdims=True)


# --------------------------------------------------------------------------- #
# Tiling heuristics
# --------------------------------------------------------------------------- #
def _round_up(x, m):
    return -(-x // m) * m


def _choose_tiles(B, n_elem, itemsize):
    # Packed-sublane multiple for the input dtype: 8 (32-bit), 16 (16-bit),
    # 32 (8-bit).  f32 noise / output blocks only need multiples of 8.
    sub = max(8, 32 // itemsize)
    bytes_per_elem = itemsize + 4 + 4              # x + noise(f32) + out(f32)
    budget = 16 * 1024 * 1024                      # double-buffered working set
    n128 = _round_up(n_elem, 128)

    rows_fit = budget // (2 * n128 * bytes_per_elem)
    if rows_fit >= sub:
        # Collapse the N axis entirely: one lane-dense block per row tile.
        tn = n128
        tb_cap = max(sub, (min(rows_fit, 512) // sub) * sub)
        tb = min(_round_up(B, sub), tb_cap)
        if B > sub:
            # Keep >=2 batch blocks so both v7x TensorCores get work.
            tb = min(tb, max(sub, _round_up(-(-B // 2), sub)))
    else:
        # Extremely long rows: tile the N axis with a large 128-multiple.
        tb = sub
        cols_fit = budget // (2 * sub * bytes_per_elem)
        tn = max(128, (min(cols_fit, n128) // 128) * 128)
    return tb, tn


# --------------------------------------------------------------------------- #
# Wrapper
# --------------------------------------------------------------------------- #
def dequantization_forward(x, max_val, eps=1e-5, noise=None, seed=0):
    """Pallas forward pass of Dequantization.

    x:     (B, C, H, W) integer-valued pixels (any int/float dtype).
    noise: optional (B, C, H, W) uniform noise in [0, 1).  If None, noise is
           generated in the wrapper with jax.random (key = PRNGKey(seed)).
    Returns (out (B, C, H, W) float32, log_det (B,) float32).
    """
    orig_shape = x.shape
    B = orig_shape[0]
    n_elem = int(np.prod(orig_shape[1:]))

    x2 = x.reshape(B, n_elem)
    if noise is None:
        noise = jax.random.uniform(jax.random.PRNGKey(seed), orig_shape,
                                   dtype=jnp.float32)
    u2 = jnp.asarray(noise, dtype=jnp.float32).reshape(B, n_elem)

    itemsize = jnp.dtype(x2.dtype).itemsize
    tb, tn = _choose_tiles(B, n_elem, itemsize)
    Bp = _round_up(B, tb)
    Np = _round_up(n_elem, tn)
    if Bp != B or Np != n_elem:
        x2 = jnp.pad(x2, ((0, Bp - B), (0, Np - n_elem)))
        u2 = jnp.pad(u2, ((0, Bp - B), (0, Np - n_elem)))

    grid = (Bp // tb, Np // tn)
    mask_cols = Np != n_elem
    const = float((np.log(1.0 - eps) - np.log(max_val)) * n_elem)

    kernel = functools.partial(
        _dequant_kernel,
        inv_max_val=float(1.0 / max_val), eps=float(eps), const=const,
        tn=tn, n_valid=n_elem, mask_cols=mask_cols)

    out_shape = (jax.ShapeDtypeStruct((Bp, Np), jnp.float32),
                 jax.ShapeDtypeStruct((Bp, 1), jnp.float32))

    out2, ld2 = pl.pallas_call(
        kernel,
        out_shape=out_shape,
        grid_spec=pltpu.PrefetchScalarGridSpec(
            num_scalar_prefetch=0,
            grid=grid,
            in_specs=[pl.BlockSpec((tb, tn), lambda b, n: (b, n)),
                      pl.BlockSpec((tb, tn), lambda b, n: (b, n))],
            out_specs=(pl.BlockSpec((tb, tn), lambda b, n: (b, n)),
                       pl.BlockSpec((tb, 1), lambda b, n: (b, 0)))),
        compiler_params=pltpu.CompilerParams(
            dimension_semantics=("parallel", "arbitrary"),
            vmem_limit_bytes=32 * 1024 * 1024),
    )(x2, u2)

    return out2[:B, :n_elem].reshape(orig_shape), ld2[:B, 0]


# --------------------------------------------------------------------------- #
# Pure-JAX reference (mirrors the PyTorch forward, with explicit noise)
# --------------------------------------------------------------------------- #
def _reference_forward(x, noise, max_val, eps=1e-5):
    x = x.astype(jnp.float32)
    B = x.shape[0]
    n_elem = int(np.prod(x.shape[1:]))
    red_axes = tuple(range(1, x.ndim))
    log_det = jnp.full((B,), -np.log(max_val) * n_elem, dtype=jnp.float32)
    out = (x + noise.astype(jnp.float32)) / max_val
    log_det = log_det + np.log(1 - eps) * n_elem
    out = (1 - eps) * out + eps * 0.5
    log_det = log_det + jnp.sum(jnp.log(1.0 / (out - out ** 2)), axis=red_axes)
    out = -jnp.log(out ** (-1) - 1.0)
    return out, log_det


if __name__ == "__main__":
    key = jax.random.PRNGKey(0)
    kx, ku, kx2, ku2 = jax.random.split(key, 4)

    max_val = 256
    eps = 1e-5

    # ---- Case 1: int32 pixels, lane-aligned shape, external noise ----------
    B, C, H, W = 2, 4, 16, 16
    x = jax.random.randint(kx, (B, C, H, W), 0, max_val)             # int32
    noise = jax.random.uniform(ku, (B, C, H, W), dtype=jnp.float32)

    out, log_det = dequantization_forward(x, max_val, eps=eps, noise=noise)
    out, log_det = jax.block_until_ready((out, log_det))

    ref_out, ref_ld = _reference_forward(x, noise, max_val, eps=eps)
    assert out.shape == (B, C, H, W) and out.dtype == jnp.float32
    assert log_det.shape == (B,) and log_det.dtype == jnp.float32
    assert jnp.allclose(out, ref_out, atol=1e-2, rtol=2e-3)
    assert jnp.allclose(log_det, ref_ld, atol=2.5e-1, rtol=2e-4)

    # ---- Case 2: uint8 pixels (native narrow load), awkward shape ----------
    B2, C2, H2, W2 = 3, 3, 10, 10                                    # 300 cols
    x_u8 = jax.random.randint(kx2, (B2, C2, H2, W2), 0, max_val).astype(jnp.uint8)
    noise2 = jax.random.uniform(ku2, (B2, C2, H2, W2), dtype=jnp.float32)

    out_u8, ld_u8 = dequantization_forward(x_u8, max_val, eps=eps, noise=noise2)
    out_u8, ld_u8 = jax.block_until_ready((out_u8, ld_u8))

    ref_out2, ref_ld2 = _reference_forward(x_u8, noise2, max_val, eps=eps)
    assert out_u8.shape == (B2, C2, H2, W2) and ld_u8.shape == (B2,)
    assert jnp.allclose(out_u8, ref_out2, atol=1e-2, rtol=2e-3)
    assert jnp.allclose(ld_u8, ref_ld2, atol=2.5e-1, rtol=2e-4)

    # ---- Case 3: wrapper-generated noise (noise=None) -----------------------
    out_p, log_det_p = dequantization_forward(x, max_val, eps=eps, seed=42)
    out_p, log_det_p = jax.block_until_ready((out_p, log_det_p))
    assert out_p.shape == (B, C, H, W) and log_det_p.shape == (B,)
    assert bool(jnp.all(jnp.isfinite(out_p)))
    assert bool(jnp.all(jnp.isfinite(log_det_p)))
    # Invert the flow: sigmoid(out) must recover x + u with u in [0, 1).
    y = jax.nn.sigmoid(out_p)
    v = (y - eps * 0.5) / (1.0 - eps) * max_val
    xf = x.astype(jnp.float32)
    assert bool(jnp.all(v >= xf - 1e-2)) and bool(jnp.all(v <= xf + 1.0 + 1e-2))

    print("KERNEL_OK")
</pallas_src>

<mosaic_0001>
module attributes {stable_mosaic.version = 11 : i64} {
  func.func @_dequant_kernel(%arg0: i32, %arg1: i32, %arg2: memref<8x1024xi32, #tpu.memory_space<vmem>>, %arg3: memref<8x1024xf32, #tpu.memory_space<vmem>>, %arg4: memref<8x1024xf32, #tpu.memory_space<vmem>>, %arg5: memref<8x1xf32, #tpu.memory_space<vmem>>) attributes {dimension_semantics = [#tpu.dimension_semantics<parallel>, #tpu.dimension_semantics<arbitrary>], iteration_bounds = array<i64: 1, 1>, scalar_prefetch = 0 : i64, scratch_operands = 0 : i64, tpu.core_type = #tpu.core_type<tc>, window_params = [{transform_indices = @transform_0, window_bounds = array<i64: 8, 1024>}, {transform_indices = @transform_1, window_bounds = array<i64: 8, 1024>}, {transform_indices = @transform_2, window_bounds = array<i64: 8, 1024>}, {transform_indices = @transform_3, window_bounds = array<i64: 8, 1>}]} {
    %c0 = arith.constant 0 : index
    %c0_0 = arith.constant 0 : index
    %0 = vector.load %arg2[%c0, %c0_0] : memref<8x1024xi32, #tpu.memory_space<vmem>>, vector<8x1024xi32>
    %1 = arith.sitofp %0 : vector<8x1024xi32> to vector<8x1024xf32>
    %c0_1 = arith.constant 0 : index
    %c0_2 = arith.constant 0 : index
    %2 = vector.load %arg3[%c0_1, %c0_2] : memref<8x1024xf32, #tpu.memory_space<vmem>>, vector<8x1024xf32>
    %3 = arith.addf %1, %2 : vector<8x1024xf32>
    %cst = arith.constant 3.906250e-03 : f32
    %4 = vector.broadcast %cst : f32 to vector<8x1024xf32>
    %5 = arith.mulf %3, %4 : vector<8x1024xf32>
    %cst_3 = arith.constant 0.999989986 : f32
    %6 = vector.broadcast %cst_3 : f32 to vector<8x1024xf32>
    %7 = arith.mulf %6, %5 : vector<8x1024xf32>
    %cst_4 = arith.constant 5.000000e-06 : f32
    %8 = vector.broadcast %cst_4 : f32 to vector<8x1024xf32>
    %9 = arith.addf %7, %8 : vector<8x1024xf32>
    %10 = math.log %9 : vector<8x1024xf32>
    %cst_5 = arith.constant 1.000000e+00 : f32
    %11 = vector.broadcast %cst_5 : f32 to vector<8x1024xf32>
    %12 = arith.subf %11, %9 : vector<8x1024xf32>
    %13 = math.log %12 : vector<8x1024xf32>
    %14 = arith.subf %10, %13 : vector<8x1024xf32>
    %c0_6 = arith.constant 0 : index
    %c0_7 = arith.constant 0 : index
    %15 = vector.load %arg4[%c0_6, %c0_7] : memref<8x1024xf32, #tpu.memory_space<vmem>>, vector<8x1024xf32>
    tpu.vector_store %arg4[%c0_6, %c0_7], %14 {strides = array<i32>} : memref<8x1024xf32, #tpu.memory_space<vmem>>, vector<8x1024xf32>,
    %16 = arith.addf %10, %13 : vector<8x1024xf32>
    %cst_8 = arith.constant 0.000000e+00 : f32
    %17 = vector.broadcast %cst_8 : f32 to vector<8x1024xf32>
    %18 = arith.subf %17, %16 : vector<8x1024xf32>
    %c0_i32 = arith.constant 0 : i32
    %19 = arith.cmpi eq, %arg1, %c0_i32 : i32
    %20 = arith.extui %19 : i1 to i32
    %c0_i32_9 = arith.constant 0 : i32
    %21 = arith.cmpi ne, %20, %c0_i32_9 : i32
    scf.if %21 {
      %cst_15 = arith.constant -5678.27197 : f32
      %27 = vector.broadcast %cst_15 : f32 to vector<8x1xf32>
      %c0_16 = arith.constant 0 : index
      %c0_17 = arith.constant 0 : index
      %28 = vector.load %arg5[%c0_16, %c0_17] : memref<8x1xf32, #tpu.memory_space<vmem>>, vector<8x1xf32>
      tpu.vector_store %arg5[%c0_16, %c0_17], %27 {strides = array<i32>} : memref<8x1xf32, #tpu.memory_space<vmem>>, vector<8x1xf32>,
    } else {
    }
    %c0_10 = arith.constant 0 : index
    %c0_11 = arith.constant 0 : index
    %22 = vector.load %arg5[%c0_10, %c0_11] : memref<8x1xf32, #tpu.memory_space<vmem>>, vector<8x1xf32>
    %cst_12 = arith.constant dense<0.000000e+00> : vector<8xf32>
    %23 = vector.multi_reduction <add>, %18, %cst_12 [1] : vector<8x1024xf32> to vector<8xf32>
    %24 = vector.shape_cast %23 : vector<8xf32> to vector<8x1xf32>
    %25 = arith.addf %22, %24 : vector<8x1xf32>
    %c0_13 = arith.constant 0 : index
    %c0_14 = arith.constant 0 : index
    %26 = vector.load %arg5[%c0_13, %c0_14] : memref<8x1xf32, #tpu.memory_space<vmem>>, vector<8x1xf32>
    tpu.vector_store %arg5[%c0_13, %c0_14], %25 {strides = array<i32>} : memref<8x1xf32, #tpu.memory_space<vmem>>, vector<8x1xf32>,
    return
  }
  func.func @transform_0(%arg0: i32, %arg1: i32) -> (i32, i32) {
    %c0_i32 = arith.constant 0 : i32
    return %arg0, %arg1 : i32, i32
  }
  func.func @transform_1(%arg0: i32, %arg1: i32) -> (i32, i32) {
    %c0_i32 = arith.constant 0 : i32
    return %arg0, %arg1 : i32, i32
  }
  func.func @transform_2(%arg0: i32, %arg1: i32) -> (i32, i32) {
    %c0_i32 = arith.constant 0 : i32
    return %arg0, %arg1 : i32, i32
  }
  func.func @transform_3(%arg0: i32, %arg1: i32) -> (i32, i32) {
    %c0_i32 = arith.constant 0 : i32
    %c0_i32_0 = arith.constant 0 : i32
    return %arg0, %c0_i32 : i32, i32
  }
}

</mosaic_0001>

<llo_original>
// kernel: tpu_custom_call.1
$region0: #{tpu_custom_call.1}
  #allocation0 [shape = 'u32[]', space=smem, size = 0x4, offset = 0x4, fixed_abs, tag = 'smem constant byte address 0x4 - core index']
  #allocation1 [shape = 'u32[72,128]{1,0:T(1,128)}', space=vmem, size = 0x9000, scoped, tag = 'internal scratch']
  %s0 = inlined_call_operand.hbm [shape: s32[8,1024], index: 0, kind: input, shape index: {}]
  %s1 = inlined_call_operand.hbm [shape: f32[8,1024], index: 1, kind: input, shape index: {}]
  %s2 = inlined_call_operand.hbm [shape: f32[8,1024], index: 2, kind: output, shape index: {0}]
  %s3 = inlined_call_operand.vmem [shape: f32[8,1], index: 3, kind: output, shape index: {1}]
  %4 = xla_tuple %s2, %s3
  %s5 = sld [smem:[#allocation0]]
  $region38: #{tpu_custom_call.1} parent=0
    _
  %s7 = ssub.s32 1, %s5
  %s8 = scalar_select 0, %s7, %s5
  $region1: #{tpu_custom_call.1} parent=0
    #allocation2 [shape = 'u8[32768]{0}', space=vmem, size = 0x8000, scoped, tag = 'input window, operand 0, single buffered']
    #allocation3 [shape = 's32[1]{0}', space=sflag, size = 0x4, scoped, tag = 'scoped memory for tpu_custom_call.1']
    #allocation4 [shape = 's32[1]{0}', space=sflag, size = 0x4, scoped, tag = 'scoped memory for tpu_custom_call.1']
    #allocation5 [shape = 'u8[32768]{0}', space=vmem, size = 0x8000, scoped, tag = 'input window, operand 1, single buffered']
    #allocation6 [shape = 's32[1]{0}', space=sflag, size = 0x4, scoped, tag = 'scoped memory for tpu_custom_call.1']
    #allocation7 [shape = 'u8[32768]{0}', space=vmem, size = 0x8000, scoped, tag = 'output window, operand 0, single buffered']
    %9 = vsyncpa [#allocation3], 0
    %10 = vsyncpa [#allocation6], 0
    %11 = vsyncpa [#allocation4], 0
    // Predicated region
    $region2: #{tpu_custom_call.1} parent=1 // pred_check
      _
    $region3: #{tpu_custom_call.1} parent=1 // pred_check_branch
      %13 = sbr.rel (0) target = $region5
    $region4: #{tpu_custom_call.1} parent=1 // pred_region
      %15 = vsyncadd [#allocation3], 0
      %s17 = sshll.u32 %s0, 4
      %s18 = int_to_ptr.hbm [resolvable:$true] %s17
      %s19 = sshll.u32 [#allocation2], 4
      %s20 = int_to_ptr.vmem [resolvable:$true] %s19
      %22 = dma.hbm_to_vmem [thread:$0]  %s18, 1024, %s20, [#allocation3]
    $region5: #{tpu_custom_call.1} parent=1 // pred_fallthru
      _
    // Predicated region
    $region6: #{tpu_custom_call.1} parent=1 // pred_check
      _
    $region7: #{tpu_custom_call.1} parent=1 // pred_check_branch
      %24 = sbr.rel (0) target = $region9
    $region8: #{tpu_custom_call.1} parent=1 // pred_region
      %26 = vsyncadd [#allocation6], 0
      %s28 = sshll.u32 %s1, 4
      %s29 = int_to_ptr.hbm [resolvable:$true] %s28
      %s30 = sshll.u32 [#allocation5], 4
      %s31 = int_to_ptr.vmem [resolvable:$true] %s30
      %33 = dma.hbm_to_vmem [thread:$0]  %s29, 1024, %s31, [#allocation6]
    $region9: #{tpu_custom_call.1} parent=1 // pred_fallthru
      _
    // Predicated region
    $region10: #{tpu_custom_call.1} parent=1 // pred_check
      _
    $region11: #{tpu_custom_call.1} parent=1 // pred_check_branch
      %35 = sbr.rel (0) target = $region13
    $region12: #{tpu_custom_call.1} parent=1 // pred_region
      %37 = dma.done [#allocation3], 1024
    $region13: #{tpu_custom_call.1} parent=1 // pred_fallthru
      _
    // Predicated region
    $region14: #{tpu_custom_call.1} parent=1 // pred_check
      _
    $region15: #{tpu_custom_call.1} parent=1 // pred_check_branch
      %39 = sbr.rel (0) target = $region17
    $region16: #{tpu_custom_call.1} parent=1 // pred_region
      %41 = dma.done [#allocation6], 1024
    $region17: #{tpu_custom_call.1} parent=1 // pred_fallthru
      _
    %v42 = vld [vmem:[#allocation2] sm:$0xff]
    %v43 = vld [vmem:[#allocation2 + $0x8] sm:$0xff]
    %v44 = vld [vmem:[#allocation2 + $0x10] sm:$0xff]
    %v45 = vld [vmem:[#allocation2 + $0x18] sm:$0xff]
    %v46 = vld [vmem:[#allocation2 + $0x20] sm:$0xff]
    %v47 = vld [vmem:[#allocation2 + $0x28] sm:$0xff]
    %v48 = vld [vmem:[#allocation2 + $0x30] sm:$0xff]
    %v49 = vld [vmem:[#allocation2 + $0x38] sm:$0xff]
    %v50 = vcvt.s32.f32 %v42
    %v51 = vcvt.s32.f32 %v43
    %v52 = vcvt.s32.f32 %v44
    %v53 = vcvt.s32.f32 %v45
    %v54 = vcvt.s32.f32 %v46
    %v55 = vcvt.s32.f32 %v47
    %v56 = vcvt.s32.f32 %v48
    %v57 = vcvt.s32.f32 %v49
    %v58 = vld [vmem:[#allocation5] sm:$0xff]
    %v59 = vld [vmem:[#allocation5 + $0x8] sm:$0xff]
    %v60 = vld [vmem:[#allocation5 + $0x10] sm:$0xff]
    %v61 = vld [vmem:[#allocation5 + $0x18] sm:$0xff]
    %v62 = vld [vmem:[#allocation5 + $0x20] sm:$0xff]
    %v63 = vld [vmem:[#allocation5 + $0x28] sm:$0xff]
    %v64 = vld [vmem:[#allocation5 + $0x30] sm:$0xff]
    %v65 = vld [vmem:[#allocation5 + $0x38] sm:$0xff]
    %v66 = vadd.f32 %v50, %v58
    %v67 = vadd.f32 %v51, %v59
    %v68 = vadd.f32 %v52, %v60
    %v69 = vadd.f32 %v53, %v61
    %v70 = vadd.f32 %v54, %v62
    %v71 = vadd.f32 %v55, %v63
    %v72 = vadd.f32 %v56, %v64
    %v73 = vadd.f32 %v57, %v65
    %v74 = vmul.f32 %v66, 0.00390625
    %v75 = vmul.f32 %v67, 0.00390625
    %v76 = vmul.f32 %v68, 0.00390625
    %v77 = vmul.f32 %v69, 0.00390625
    %v78 = vmul.f32 %v70, 0.00390625
    %v79 = vmul.f32 %v71, 0.00390625
    %v80 = vmul.f32 %v72, 0.00390625
    %v81 = vmul.f32 %v73, 0.00390625
    %v82 = vmul.f32 %v74, 0.99999
    %v83 = vmul.f32 %v75, 0.99999
    %v84 = vmul.f32 %v76, 0.99999
    %v85 = vmul.f32 %v77, 0.99999
    %v86 = vmul.f32 %v78, 0.99999
    %v87 = vmul.f32 %v79, 0.99999
    %v88 = vmul.f32 %v80, 0.99999
    %v89 = vmul.f32 %v81, 0.99999
    %v90 = vadd.f32 %v82, 5e-06
    %v91 = vadd.f32 %v83, 5e-06
    %v92 = vadd.f32 %v84, 5e-06
    %v93 = vadd.f32 %v85, 5e-06
    %v94 = vadd.f32 %v86, 5e-06
    %v95 = vadd.f32 %v87, 5e-06
    %v96 = vadd.f32 %v88, 5e-06
    %v97 = vadd.f32 %v89, 5e-06
    %v98 = vlog2.pop %v90
    %v99 = vmul.f32 %v98, 0.6931472
    %v100 = vlog2.pop %v91
    %v101 = vmul.f32 %v100, 0.6931472
    %v102 = vlog2.pop %v92
    %v103 = vmul.f32 %v102, 0.6931472
    %v104 = vlog2.pop %v93
    %v105 = vmul.f32 %v104, 0.6931472
    %v106 = vlog2.pop %v94
    %v107 = vmul.f32 %v106, 0.6931472
    %v108 = vlog2.pop %v95
    %v109 = vmul.f32 %v108, 0.6931472
    %v110 = vlog2.pop %v96
    %v111 = vmul.f32 %v110, 0.6931472
    %v112 = vlog2.pop %v97
    %v113 = vmul.f32 %v112, 0.6931472
    %v114 = vsub.f32 1.0, %v90
    %v115 = vsub.f32 1.0, %v91
    %v116 = vsub.f32 1.0, %v92
    %v117 = vsub.f32 1.0, %v93
    %v118 = vsub.f32 1.0, %v94
    %v119 = vsub.f32 1.0, %v95
    %v120 = vsub.f32 1.0, %v96
    %v121 = vsub.f32 1.0, %v97
    %v122 = vlog2.pop %v114
    %v123 = vmul.f32 %v122, 0.6931472
    %v124 = vlog2.pop %v115
    %v125 = vmul.f32 %v124, 0.6931472
    %v126 = vlog2.pop %v116
    %v127 = vmul.f32 %v126, 0.6931472
    %v128 = vlog2.pop %v117
    %v129 = vmul.f32 %v128, 0.6931472
    %v130 = vlog2.pop %v118
    %v131 = vmul.f32 %v130, 0.6931472
    %v132 = vlog2.pop %v119
    %v133 = vmul.f32 %v132, 0.6931472
    %v134 = vlog2.pop %v120
    %v135 = vmul.f32 %v134, 0.6931472
    %v136 = vlog2.pop %v121
    %v137 = vmul.f32 %v136, 0.6931472
    %v138 = vsub.f32 %v99, %v123
    %v139 = vsub.f32 %v101, %v125
    %v140 = vsub.f32 %v103, %v127
    %v141 = vsub.f32 %v105, %v129
    %v142 = vsub.f32 %v107, %v131
    %v143 = vsub.f32 %v109, %v133
    %v144 = vsub.f32 %v111, %v135
    %v145 = vsub.f32 %v113, %v137
    %146 = vst [vmem:[#allocation7] sm:$0xff] %v138
    %147 = vst [vmem:[#allocation7 + $0x8] sm:$0xff] %v139
    %148 = vst [vmem:[#allocation7 + $0x10] sm:$0xff] %v140
    %149 = vst [vmem:[#allocation7 + $0x18] sm:$0xff] %v141
    %150 = vst [vmem:[#allocation7 + $0x20] sm:$0xff] %v142
    %151 = vst [vmem:[#allocation7 + $0x28] sm:$0xff] %v143
    %152 = vst [vmem:[#allocation7 + $0x30] sm:$0xff] %v144
    %153 = vst [vmem:[#allocation7 + $0x38] sm:$0xff] %v145
    %v154 = vadd.f32 %v99, %v123
    %v155 = vadd.f32 %v101, %v125
    %v156 = vadd.f32 %v103, %v127
    %v157 = vadd.f32 %v105, %v129
    %v158 = vadd.f32 %v107, %v131
    %v159 = vadd.f32 %v109, %v133
    %v160 = vadd.f32 %v111, %v135
    %v161 = vadd.f32 %v113, %v137
    %v162 = vsub.f32 0.0, %v154
    %v163 = vsub.f32 0.0, %v155
    %v164 = vsub.f32 0.0, %v156
    %v165 = vsub.f32 0.0, %v157
    %v166 = vsub.f32 0.0, %v158
    %v167 = vsub.f32 0.0, %v159
    %v168 = vsub.f32 0.0, %v160
    %v169 = vsub.f32 0.0, %v161
    %p170 = scmp.eq.s32.totalorder 0, 0
    // Predicated region
    $region18: #{tpu_custom_call.1} parent=1 // pred_check
      %p171 = pneg %p170
    $region19: #{tpu_custom_call.1} parent=1 // pred_check_branch
      %173 = sbr.rel (%p171) target = $region21
    $region20: #{tpu_custom_call.1} parent=1 // pred_region
      %vm174 = vcmask 7168
      %175 = vst.msk [vmem:[%s3] sm:$0xff] %vm174, -5678.272
    $region21: #{tpu_custom_call.1} parent=1 // pred_fallthru
      _
    %v176 = vld [vmem:[%s3] sm:$0xff]
    %v177 = vadd.f32 %v162, %v163
    %v178 = vadd.f32 %v177, %v164
    %v179 = vadd.f32 %v178, %v165
    %v180 = vadd.f32 %v179, %v166
    %v181 = vadd.f32 %v180, %v167
    %v182 = vadd.f32 %v181, %v168
    %v183 = vadd.f32 %v182, %v169
    %184 = vadd.xlane.f32.xlu0 %v183
    %v185 = vpop.xlane.xlu0 %184
    %v186 = vadd.f32 %v176, %v185
    %vm187 = vcmask 7168
    %188 = vst.msk [vmem:[%s3] sm:$0xff] %vm187, %v186
    // Predicated region
    $region22: #{tpu_custom_call.1} parent=1 // pred_check
      _
    $region23: #{tpu_custom_call.1} parent=1 // pred_check_branch
      %190 = sbr.rel (0) target = $region25
    $region24: #{tpu_custom_call.1} parent=1 // pred_region
      %192 = vsyncadd [#allocation4], 0
      %s194 = sshll.u32 [#allocation7], 4
      %s195 = int_to_ptr.vmem [resolvable:$true] %s194
      %s196 = sshll.u32 %s2, 4
      %s197 = int_to_ptr.hbm [resolvable:$true] %s196
      %199 = dma.vmem_to_hbm [thread:$0]  %s195, 1024, %s197, [#allocation4]
    $region25: #{tpu_custom_call.1} parent=1 // pred_fallthru
      _
    // Predicated region
    $region26: #{tpu_custom_call.1} parent=1 // pred_check
      _
    $region27: #{tpu_custom_call.1} parent=1 // pred_check_branch
      %201 = sbr.rel (0) target = $region29
    $region28: #{tpu_custom_call.1} parent=1 // pred_region
      _
    $region29: #{tpu_custom_call.1} parent=1 // pred_fallthru
      _
    // Predicated region
    $region30: #{tpu_custom_call.1} parent=1 // pred_check
      _
    $region31: #{tpu_custom_call.1} parent=1 // pred_check_branch
      %203 = sbr.rel (0) target = $region33
    $region32: #{tpu_custom_call.1} parent=1 // pred_region
      %205 = dma.done [#allocation4], 1024
    $region33: #{tpu_custom_call.1} parent=1 // pred_fallthru
      _
    // Predicated region
    $region34: #{tpu_custom_call.1} parent=1 // pred_check
      _
    $region35: #{tpu_custom_call.1} parent=1 // pred_check_branch
      %207 = sbr.rel (0) target = $region37
    $region36: #{tpu_custom_call.1} parent=1 // pred_region
      _
    $region37: #{tpu_custom_call.1} parent=1 // pred_fallthru
      _
    %208 = vsyncpa [#allocation3], 1
    %209 = vsyncpa [#allocation6], 1
    %210 = vsyncpa [#allocation4], 1

</llo_original>
